<compile_context>
chip_gen: v6e
topology: v6e:2x2x1
jax: 0.10.0
libtpu: 0.0.40
codegen_flags: <defaults>
</compile_context>

<pallas_src>
import jax
import jax.numpy as jnp
from jax.experimental import pallas as pl
from jax.experimental.pallas import tpu as pltpu


def _policy_kernel(xt_ref, w1_ref, b1_ref, w2d_ref, b2d_ref, out_ref):
    """One batch tile, transposed (feature, batch) layout.

    xt_ref : (4, TB)    observations, transposed (batch along lanes)
    w1_ref : (128, 4)   affine1.weight (PyTorch (out, in) layout)
    b1_ref : (128, 1)   affine1.bias as a column
    w2d_ref: (128, 1)   affine2.weight[0] - affine2.weight[1], as a column
    b2d_ref: (1, 1)     affine2.bias[0]  - affine2.bias[1]
    out_ref: (2, TB)    [p(action0); p(action1)], transposed
    """
    xt = xt_ref[...]                      # (4, TB)
    w1 = w1_ref[...]                      # (128, 4)

    # affine1: K=4 contraction as 4 unrolled VPU FMAs (skip the MXU round trip).
    h = w1[:, 0:1] * xt[0:1, :]           # (128, TB)
    for k in range(1, 4):
        h = h + w1[:, k : k + 1] * xt[k : k + 1, :]
    h = jnp.maximum(h + b1_ref[...], 0.0)  # + bias, ReLU

    # 2-class softmax collapsed to a sigmoid of the logit difference:
    #   d = l0 - l1 ;  p0 = 1 / (1 + exp(-d)) ;  p1 = 1 - p0
    # Exact-f32 VPU multiply + reduce over the 128 hidden units (lane-dense).
    d = jnp.sum(w2d_ref[...] * h, axis=0, keepdims=True) + b2d_ref[...]  # (1, TB)
    p0 = 1.0 / (1.0 + jnp.exp(-d))        # one exp per column (EUP)
    p1 = 1.0 - p0

    out_ref[0:1, :] = p0.astype(out_ref.dtype)
    out_ref[1:2, :] = p1.astype(out_ref.dtype)


def _round_up(n, m):
    return ((n + m - 1) // m) * m


def policy_forward(x, w1, b1, w2, b2, *, block_b=2048):
    """Forward pass of Policy.

    x  : (B, 4) float32 observations
    w1 : (128, 4), b1: (128,)   -- affine1 (PyTorch nn.Linear layout)
    w2 : (2, 128), b2: (2,)     -- affine2
    returns (B, 2) action probabilities.
    """
    B = x.shape[0]
    tb = min(block_b, _round_up(B, 128))      # lane-dense tile, multiple of 128
    bp = _round_up(B, tb)                     # padded batch
    grid = bp // tb

    # Wrapper-side layout plumbing: transposed, zero-padded batch + folded head.
    xt = jnp.zeros((4, bp), jnp.float32).at[:, :B].set(x.T.astype(jnp.float32))
    b1c = b1.reshape(128, 1).astype(jnp.float32)
    w2d = (w2[0] - w2[1]).reshape(128, 1).astype(jnp.float32)
    b2d = (b2[0] - b2[1]).reshape(1, 1).astype(jnp.float32)

    weight_bytes = (128 * 4 + 128 + 128 + 1) * 4
    cost = pl.CostEstimate(
        flops=bp * (2 * 4 * 128 + 2 * 128 + 8),
        transcendentals=bp,
        bytes_accessed=(4 * bp + 2 * bp) * 4 + weight_bytes,
    )

    out_t = pl.pallas_call(
        _policy_kernel,
        out_shape=jax.ShapeDtypeStruct((2, bp), jnp.float32),
        grid=(grid,),
        in_specs=[
            pl.BlockSpec((4, tb), lambda i: (0, i)),    # x^T, tiled over batch
            pl.BlockSpec((128, 4), lambda i: (0, 0)),   # w1, VMEM-resident
            pl.BlockSpec((128, 1), lambda i: (0, 0)),   # b1, VMEM-resident
            pl.BlockSpec((128, 1), lambda i: (0, 0)),   # w2 diff, VMEM-resident
            pl.BlockSpec((1, 1), lambda i: (0, 0)),     # b2 diff, VMEM-resident
        ],
        out_specs=pl.BlockSpec((2, tb), lambda i: (0, i)),
        compiler_params=pltpu.CompilerParams(
            dimension_semantics=("parallel",),          # shard across TCs (v7x)
        ),
        cost_estimate=cost,
    )(xt, w1.astype(jnp.float32), b1c, w2d, b2d)

    return out_t[:, :B].T                               # back to (B, 2)


def init_params(key):
    """Deterministic init mirroring nn.Linear's U(-1/sqrt(fan_in), 1/sqrt(fan_in)),
    stored in PyTorch layout: weight (out_features, in_features), bias (out_features,)."""
    k1, k2, k3, k4 = jax.random.split(key, 4)
    bound1 = 1.0 / jnp.sqrt(4.0)
    bound2 = 1.0 / jnp.sqrt(128.0)
    w1 = jax.random.uniform(k1, (128, 4), jnp.float32, -bound1, bound1)
    b1 = jax.random.uniform(k2, (128,), jnp.float32, -bound1, bound1)
    w2 = jax.random.uniform(k3, (2, 128), jnp.float32, -bound2, bound2)
    b2 = jax.random.uniform(k4, (2,), jnp.float32, -bound2, bound2)
    return w1, b1, w2, b2


def reference_forward(x, w1, b1, w2, b2):
    # HIGHEST precision so the reference is true-f32, matching the kernel's
    # exact f32 VPU arithmetic (and PyTorch CPU semantics).
    hp = jax.lax.Precision.HIGHEST
    h = jnp.maximum(jnp.dot(x, w1.T, precision=hp) + b1, 0.0)
    logits = jnp.dot(h, w2.T, precision=hp) + b2
    return jax.nn.softmax(logits, axis=-1)


if __name__ == "__main__":
    key = jax.random.PRNGKey(0)
    pk, xk1, xk2 = jax.random.split(key, 3)
    w1, b1, w2, b2 = init_params(pk)

    # Small CartPole-style batch (single grid step, padded to one 128-wide tile).
    x_small = jax.random.normal(xk1, (8, 4), jnp.float32)
    out_small = jax.block_until_ready(policy_forward(x_small, w1, b1, w2, b2))
    ref_small = reference_forward(x_small, w1, b1, w2, b2)
    assert out_small.shape == (8, 2)
    assert jnp.allclose(out_small, ref_small, atol=1e-5, rtol=1e-5)
    assert jnp.allclose(jnp.sum(out_small, axis=-1), 1.0, atol=1e-5)

    # Non-multiple batch with a small block to exercise the multi-step
    # parallel grid and the zero-padded tail (block_b=128 -> grid of 8).
    x_big = jax.random.normal(xk2, (1000, 4), jnp.float32)
    out_big = jax.block_until_ready(
        policy_forward(x_big, w1, b1, w2, b2, block_b=128)
    )
    ref_big = reference_forward(x_big, w1, b1, w2, b2)
    assert out_big.shape == (1000, 2)
    assert jnp.allclose(out_big, ref_big, atol=1e-5, rtol=1e-5)
    assert jnp.allclose(jnp.sum(out_big, axis=-1), 1.0, atol=1e-5)

    print("KERNEL_OK")
</pallas_src>

<mosaic_0001>
module attributes {stable_mosaic.version = 11 : i64} {
  func.func @_policy_kernel(%arg0: i32, %arg1: memref<4x128xf32, #tpu.memory_space<vmem>>, %arg2: memref<128x4xf32, #tpu.memory_space<vmem>>, %arg3: memref<128x1xf32, #tpu.memory_space<vmem>>, %arg4: memref<128x1xf32, #tpu.memory_space<vmem>>, %arg5: memref<1x1xf32, #tpu.memory_space<vmem>>, %arg6: memref<2x128xf32, #tpu.memory_space<vmem>>) attributes {dimension_semantics = [#tpu.dimension_semantics<parallel>], iteration_bounds = array<i64: 1>, scalar_prefetch = 0 : i64, scratch_operands = 0 : i64, tpu.core_type = #tpu.core_type<tc>, window_params = [{transform_indices = @transform_0, window_bounds = array<i64: 4, 128>}, {pipeline_mode = #tpu.pipeline_mode<synchronous>, transform_indices = @transform_1, window_bounds = array<i64: 128, 4>}, {pipeline_mode = #tpu.pipeline_mode<synchronous>, transform_indices = @transform_2, window_bounds = array<i64: 128, 1>}, {pipeline_mode = #tpu.pipeline_mode<synchronous>, transform_indices = @transform_3, window_bounds = array<i64: 128, 1>}, {pipeline_mode = #tpu.pipeline_mode<synchronous>, transform_indices = @transform_4, window_bounds = array<i64: 1, 1>}, {transform_indices = @transform_5, window_bounds = array<i64: 2, 128>}]} {
    %c0 = arith.constant 0 : index
    %c0_0 = arith.constant 0 : index
    %0 = vector.load %arg1[%c0, %c0_0] : memref<4x128xf32, #tpu.memory_space<vmem>>, vector<4x128xf32>
    %c0_1 = arith.constant 0 : index
    %c0_2 = arith.constant 0 : index
    %1 = vector.load %arg2[%c0_1, %c0_2] : memref<128x4xf32, #tpu.memory_space<vmem>>, vector<128x4xf32>
    %2 = vector.extract_strided_slice %1 {offsets = [0, 0], sizes = [128, 1], strides = [1, 1]} : vector<128x4xf32> to vector<128x1xf32>
    %3 = vector.extract_strided_slice %0 {offsets = [0, 0], sizes = [1, 128], strides = [1, 1]} : vector<4x128xf32> to vector<1x128xf32>
    %4 = vector.broadcast %2 : vector<128x1xf32> to vector<128x128xf32>
    %5 = vector.broadcast %3 : vector<1x128xf32> to vector<128x128xf32>
    %6 = arith.mulf %4, %5 : vector<128x128xf32>
    %7 = vector.extract_strided_slice %1 {offsets = [0, 1], sizes = [128, 1], strides = [1, 1]} : vector<128x4xf32> to vector<128x1xf32>
    %8 = vector.extract_strided_slice %0 {offsets = [1, 0], sizes = [1, 128], strides = [1, 1]} : vector<4x128xf32> to vector<1x128xf32>
    %9 = vector.broadcast %7 : vector<128x1xf32> to vector<128x128xf32>
    %10 = vector.broadcast %8 : vector<1x128xf32> to vector<128x128xf32>
    %11 = arith.mulf %9, %10 : vector<128x128xf32>
    %12 = arith.addf %6, %11 : vector<128x128xf32>
    %13 = vector.extract_strided_slice %1 {offsets = [0, 2], sizes = [128, 1], strides = [1, 1]} : vector<128x4xf32> to vector<128x1xf32>
    %14 = vector.extract_strided_slice %0 {offsets = [2, 0], sizes = [1, 128], strides = [1, 1]} : vector<4x128xf32> to vector<1x128xf32>
    %15 = vector.broadcast %13 : vector<128x1xf32> to vector<128x128xf32>
    %16 = vector.broadcast %14 : vector<1x128xf32> to vector<128x128xf32>
    %17 = arith.mulf %15, %16 : vector<128x128xf32>
    %18 = arith.addf %12, %17 : vector<128x128xf32>
    %19 = vector.extract_strided_slice %1 {offsets = [0, 3], sizes = [128, 1], strides = [1, 1]} : vector<128x4xf32> to vector<128x1xf32>
    %20 = vector.extract_strided_slice %0 {offsets = [3, 0], sizes = [1, 128], strides = [1, 1]} : vector<4x128xf32> to vector<1x128xf32>
    %21 = vector.broadcast %19 : vector<128x1xf32> to vector<128x128xf32>
    %22 = vector.broadcast %20 : vector<1x128xf32> to vector<128x128xf32>
    %23 = arith.mulf %21, %22 : vector<128x128xf32>
    %24 = arith.addf %18, %23 : vector<128x128xf32>
    %c0_3 = arith.constant 0 : index
    %c0_4 = arith.constant 0 : index
    %25 = vector.load %arg3[%c0_3, %c0_4] : memref<128x1xf32, #tpu.memory_space<vmem>>, vector<128x1xf32>
    %26 = vector.broadcast %25 : vector<128x1xf32> to vector<128x128xf32>
    %27 = arith.addf %24, %26 : vector<128x128xf32>
    %cst = arith.constant 0.000000e+00 : f32
    %28 = vector.broadcast %cst : f32 to vector<128x128xf32>
    %29 = arith.maximumf %27, %28 : vector<128x128xf32>
    %c0_5 = arith.constant 0 : index
    %c0_6 = arith.constant 0 : index
    %30 = vector.load %arg4[%c0_5, %c0_6] : memref<128x1xf32, #tpu.memory_space<vmem>>, vector<128x1xf32>
    %31 = vector.broadcast %30 : vector<128x1xf32> to vector<128x128xf32>
    %32 = arith.mulf %31, %29 : vector<128x128xf32>
    %cst_7 = arith.constant dense<0.000000e+00> : vector<128xf32>
    %33 = vector.multi_reduction <add>, %32, %cst_7 [0] : vector<128x128xf32> to vector<128xf32>
    %34 = vector.shape_cast %33 : vector<128xf32> to vector<1x128xf32>
    %c0_8 = arith.constant 0 : index
    %c0_9 = arith.constant 0 : index
    %35 = vector.load %arg5[%c0_8, %c0_9] : memref<1x1xf32, #tpu.memory_space<vmem>>, vector<1x1xf32>
    %36 = vector.broadcast %35 : vector<1x1xf32> to vector<1x128xf32>
    %37 = arith.addf %34, %36 : vector<1x128xf32>
    %cst_10 = arith.constant 0.000000e+00 : f32
    %38 = vector.broadcast %cst_10 : f32 to vector<1x128xf32>
    %39 = arith.subf %38, %37 : vector<1x128xf32>
    %40 = math.exp %39 : vector<1x128xf32>
    %cst_11 = arith.constant 1.000000e+00 : f32
    %41 = vector.broadcast %cst_11 : f32 to vector<1x128xf32>
    %42 = arith.addf %41, %40 : vector<1x128xf32>
    %cst_12 = arith.constant 1.000000e+00 : f32
    %43 = vector.broadcast %cst_12 : f32 to vector<1x128xf32>
    %44 = arith.divf %43, %42 : vector<1x128xf32>
    %cst_13 = arith.constant 1.000000e+00 : f32
    %45 = vector.broadcast %cst_13 : f32 to vector<1x128xf32>
    %46 = arith.subf %45, %44 : vector<1x128xf32>
    %c0_14 = arith.constant 0 : index
    %c0_15 = arith.constant 0 : index
    %47 = vector.load %arg6[%c0_14, %c0_15] : memref<2x128xf32, #tpu.memory_space<vmem>>, vector<1x128xf32>
    tpu.vector_store %arg6[%c0_14, %c0_15], %44 {strides = array<i32>} : memref<2x128xf32, #tpu.memory_space<vmem>>, vector<1x128xf32>,
    %c1 = arith.constant 1 : index
    %c0_16 = arith.constant 0 : index
    %48 = vector.load %arg6[%c1, %c0_16] : memref<2x128xf32, #tpu.memory_space<vmem>>, vector<1x128xf32>
    tpu.vector_store %arg6[%c1, %c0_16], %46 {strides = array<i32>} : memref<2x128xf32, #tpu.memory_space<vmem>>, vector<1x128xf32>,
    return
  }
  func.func @transform_0(%arg0: i32) -> (i32, i32) {
    %c0_i32 = arith.constant 0 : i32
    %c0_i32_0 = arith.constant 0 : i32
    return %c0_i32, %arg0 : i32, i32
  }
  func.func @transform_1(%arg0: i32) -> (i32, i32) {
    %c0_i32 = arith.constant 0 : i32
    %c0_i32_0 = arith.constant 0 : i32
    %c0_i32_1 = arith.constant 0 : i32
    return %c0_i32, %c0_i32_0 : i32, i32
  }
  func.func @transform_2(%arg0: i32) -> (i32, i32) {
    %c0_i32 = arith.constant 0 : i32
    %c0_i32_0 = arith.constant 0 : i32
    %c0_i32_1 = arith.constant 0 : i32
    return %c0_i32, %c0_i32_0 : i32, i32
  }
  func.func @transform_3(%arg0: i32) -> (i32, i32) {
    %c0_i32 = arith.constant 0 : i32
    %c0_i32_0 = arith.constant 0 : i32
    %c0_i32_1 = arith.constant 0 : i32
    return %c0_i32, %c0_i32_0 : i32, i32
  }
  func.func @transform_4(%arg0: i32) -> (i32, i32) {
    %c0_i32 = arith.constant 0 : i32
    %c0_i32_0 = arith.constant 0 : i32
    %c0_i32_1 = arith.constant 0 : i32
    return %c0_i32, %c0_i32_0 : i32, i32
  }
  func.func @transform_5(%arg0: i32) -> (i32, i32) {
    %c0_i32 = arith.constant 0 : i32
    %c0_i32_0 = arith.constant 0 : i32
    return %c0_i32, %arg0 : i32, i32
  }
}

</mosaic_0001>

<llo_original>
// kernel: tpu_custom_call.1
$region0: #{tpu_custom_call.1}
  #allocation0 [shape = 'u32[]', space=smem, size = 0x4, offset = 0x4, fixed_abs, tag = 'smem constant byte address 0x4 - core index']
  #allocation1 [shape = 'u32[144,128]{1,0:T(1,128)}', space=vmem, size = 0x12000, scoped, tag = 'internal scratch']
  #allocation2 [shape = 'f32[1,1]{1,0:T(1,128)S(1)}', space=vmem, size = 0x200, scoped, tag = 'scoped memory for tpu_custom_call.1']
  %s0 = inlined_call_operand.vmem [shape: f32[4,128], index: 0, kind: input, shape index: {}]
  %s1 = inlined_call_operand.vmem [shape: f32[128,4], index: 1, kind: input, shape index: {}]
  %s2 = inlined_call_operand.vmem [shape: f32[128,1], index: 2, kind: input, shape index: {}]
  %s3 = inlined_call_operand.vmem [shape: f32[128,1], index: 3, kind: input, shape index: {}]
  %s4 = inlined_call_operand.<no memory space> [shape: f32[1,1], index: 4, kind: input, shape index: {}]
  %s5 = inlined_call_operand.hbm [shape: f32[2,128], index: 5, kind: output, shape index: {}]
  %s6 = sld [smem:[#allocation0]]
  $region30: #{tpu_custom_call.1} parent=0
    _
  %s8 = ssub.s32 1, %s6
  %s9 = scalar_select 0, %s8, %s6
  %v10 = vstv %s4
  %11 = vst [vmem:[#allocation2] sm:$0x1] %v10
  $region1: #{tpu_custom_call.1} parent=0
    #allocation3 [shape = 'u8[1024]{0}', space=vmem, size = 0x400, scoped, tag = 'output window, operand 0, single buffered']
    #allocation4 [shape = 's32[1]{0}', space=sflag, size = 0x4, scoped, tag = 'scoped memory for tpu_custom_call.1']
    %12 = vsyncpa [#allocation4], 0
    // Predicated region
    $region2: #{tpu_custom_call.1} parent=1 // pred_check
      _
    $region3: #{tpu_custom_call.1} parent=1 // pred_check_branch
      %14 = sbr.rel (0) target = $region5
    $region4: #{tpu_custom_call.1} parent=1 // pred_region
      _
    $region5: #{tpu_custom_call.1} parent=1 // pred_fallthru
      _
    // Predicated region
    $region6: #{tpu_custom_call.1} parent=1 // pred_check
      _
    $region7: #{tpu_custom_call.1} parent=1 // pred_check_branch
      %16 = sbr.rel (0) target = $region9
    $region8: #{tpu_custom_call.1} parent=1 // pred_region
      _
    $region9: #{tpu_custom_call.1} parent=1 // pred_fallthru
      _
    // Predicated region
    $region10: #{tpu_custom_call.1} parent=1 // pred_check
      _
    $region11: #{tpu_custom_call.1} parent=1 // pred_check_branch
      %18 = sbr.rel (0) target = $region13
    $region12: #{tpu_custom_call.1} parent=1 // pred_region
      _
    $region13: #{tpu_custom_call.1} parent=1 // pred_fallthru
      _
    // Predicated region
    $region14: #{tpu_custom_call.1} parent=1 // pred_check
      _
    $region15: #{tpu_custom_call.1} parent=1 // pred_check_branch
      %20 = sbr.rel (0) target = $region17
    $region16: #{tpu_custom_call.1} parent=1 // pred_region
      _
    $region17: #{tpu_custom_call.1} parent=1 // pred_fallthru
      _
    // Predicated region
    $region18: #{tpu_custom_call.1} parent=1 // pred_check
      _
    $region19: #{tpu_custom_call.1} parent=1 // pred_check_branch
      %22 = sbr.rel (0) target = $region21
    $region20: #{tpu_custom_call.1} parent=1 // pred_region
      _
    $region21: #{tpu_custom_call.1} parent=1 // pred_fallthru
      _
    %v23 = vld [vmem:[%s0] sm:$0xf]
    %v24 = vld [vmem:[%s1] sm:$0xff]
    %v25 = vld [vmem:[%s1 + $0x8] sm:$0xff]
    %v26 = vld [vmem:[%s1 + $0x10] sm:$0xff]
    %v27 = vld [vmem:[%s1 + $0x18] sm:$0xff]
    %v28 = vld [vmem:[%s1 + $0x20] sm:$0xff]
    %v29 = vld [vmem:[%s1 + $0x28] sm:$0xff]
    %v30 = vld [vmem:[%s1 + $0x30] sm:$0xff]
    %v31 = vld [vmem:[%s1 + $0x38] sm:$0xff]
    %v32 = vld [vmem:[%s1 + $0x40] sm:$0xff]
    %v33 = vld [vmem:[%s1 + $0x48] sm:$0xff]
    %v34 = vld [vmem:[%s1 + $0x50] sm:$0xff]
    %v35 = vld [vmem:[%s1 + $0x58] sm:$0xff]
    %v36 = vld [vmem:[%s1 + $0x60] sm:$0xff]
    %v37 = vld [vmem:[%s1 + $0x68] sm:$0xff]
    %v38 = vld [vmem:[%s1 + $0x70] sm:$0xff]
    %v39 = vld [vmem:[%s1 + $0x78] sm:$0xff]
    %41 = vset.pattern.permute.xlu0 0
    %42 = vperm.xlu0 %41, %v24
    %v43 = vpop.permute.xlu0 %42
    %46 = vset.pattern.permute.xlu0 0
    %47 = vperm.xlu0 %46, %v25
    %v48 = vpop.permute.xlu0 %47
    %51 = vset.pattern.permute.xlu0 0
    %52 = vperm.xlu0 %51, %v26
    %v53 = vpop.permute.xlu0 %52
    %56 = vset.pattern.permute.xlu0 0
    %57 = vperm.xlu0 %56, %v27
    %v58 = vpop.permute.xlu0 %57
    %61 = vset.pattern.permute.xlu0 0
    %62 = vperm.xlu0 %61, %v28
    %v63 = vpop.permute.xlu0 %62
    %66 = vset.pattern.permute.xlu0 0
    %67 = vperm.xlu0 %66, %v29
    %v68 = vpop.permute.xlu0 %67
    %71 = vset.pattern.permute.xlu0 0
    %72 = vperm.xlu0 %71, %v30
    %v73 = vpop.permute.xlu0 %72
    %76 = vset.pattern.permute.xlu0 0
    %77 = vperm.xlu0 %76, %v31
    %v78 = vpop.permute.xlu0 %77
    %81 = vset.pattern.permute.xlu0 0
    %82 = vperm.xlu0 %81, %v32
    %v83 = vpop.permute.xlu0 %82
    %86 = vset.pattern.permute.xlu0 0
    %87 = vperm.xlu0 %86, %v33
    %v88 = vpop.permute.xlu0 %87
    %91 = vset.pattern.permute.xlu0 0
    %92 = vperm.xlu0 %91, %v34
    %v93 = vpop.permute.xlu0 %92
    %96 = vset.pattern.permute.xlu0 0
    %97 = vperm.xlu0 %96, %v35
    %v98 = vpop.permute.xlu0 %97
    %101 = vset.pattern.permute.xlu0 0
    %102 = vperm.xlu0 %101, %v36
    %v103 = vpop.permute.xlu0 %102
    %106 = vset.pattern.permute.xlu0 0
    %107 = vperm.xlu0 %106, %v37
    %v108 = vpop.permute.xlu0 %107
    %111 = vset.pattern.permute.xlu0 0
    %112 = vperm.xlu0 %111, %v38
    %v113 = vpop.permute.xlu0 %112
    %116 = vset.pattern.permute.xlu0 0
    %117 = vperm.xlu0 %116, %v39
    %v118 = vpop.permute.xlu0 %117
    %v120 = vlaneseq
    %v121 = vshrl.u32 %v120, 7
    %v122 = vsub.s32 0, %v121
    %v123 = vrot.slane %v23, %v122
    %v124 = vmul.f32 %v43, %v123
    %v125 = vmul.f32 %v48, %v123
    %v126 = vmul.f32 %v53, %v123
    %v127 = vmul.f32 %v58, %v123
    %v128 = vmul.f32 %v63, %v123
    %v129 = vmul.f32 %v68, %v123
    %v130 = vmul.f32 %v73, %v123
    %v131 = vmul.f32 %v78, %v123
    %v132 = vmul.f32 %v83, %v123
    %v133 = vmul.f32 %v88, %v123
    %v134 = vmul.f32 %v93, %v123
    %v135 = vmul.f32 %v98, %v123
    %v136 = vmul.f32 %v103, %v123
    %v137 = vmul.f32 %v108, %v123
    %v138 = vmul.f32 %v113, %v123
    %v139 = vmul.f32 %v118, %v123
    %140 = vset.pattern.permute.xlu0 1
    %141 = vperm.xlu0 %140, %v24
    %v142 = vpop.permute.xlu0 %141
    %144 = vset.pattern.permute.xlu0 1
    %145 = vperm.xlu0 %144, %v25
    %v146 = vpop.permute.xlu0 %145
    %148 = vset.pattern.permute.xlu0 1
    %149 = vperm.xlu0 %148, %v26
    %v150 = vpop.permute.xlu0 %149
    %152 = vset.pattern.permute.xlu0 1
    %153 = vperm.xlu0 %152, %v27
    %v154 = vpop.permute.xlu0 %153
    %156 = vset.pattern.permute.xlu0 1
    %157 = vperm.xlu0 %156, %v28
    %v158 = vpop.permute.xlu0 %157
    %160 = vset.pattern.permute.xlu0 1
    %161 = vperm.xlu0 %160, %v29
    %v162 = vpop.permute.xlu0 %161
    %164 = vset.pattern.permute.xlu0 1
    %165 = vperm.xlu0 %164, %v30
    %v166 = vpop.permute.xlu0 %165
    %168 = vset.pattern.permute.xlu0 1
    %169 = vperm.xlu0 %168, %v31
    %v170 = vpop.permute.xlu0 %169
    %172 = vset.pattern.permute.xlu0 1
    %173 = vperm.xlu0 %172, %v32
    %v174 = vpop.permute.xlu0 %173
    %176 = vset.pattern.permute.xlu0 1
    %177 = vperm.xlu0 %176, %v33
    %v178 = vpop.permute.xlu0 %177
    %180 = vset.pattern.permute.xlu0 1
    %181 = vperm.xlu0 %180, %v34
    %v182 = vpop.permute.xlu0 %181
    %184 = vset.pattern.permute.xlu0 1
    %185 = vperm.xlu0 %184, %v35
    %v186 = vpop.permute.xlu0 %185
    %188 = vset.pattern.permute.xlu0 1
    %189 = vperm.xlu0 %188, %v36
    %v190 = vpop.permute.xlu0 %189
    %192 = vset.pattern.permute.xlu0 1
    %193 = vperm.xlu0 %192, %v37
    %v194 = vpop.permute.xlu0 %193
    %196 = vset.pattern.permute.xlu0 1
    %197 = vperm.xlu0 %196, %v38
    %v198 = vpop.permute.xlu0 %197
    %200 = vset.pattern.permute.xlu0 1
    %201 = vperm.xlu0 %200, %v39
    %v202 = vpop.permute.xlu0 %201
    %v204 = vlaneseq
    %v205 = vshrl.u32 %v204, 7
    %v206 = vsub.s32 1, %v205
    %v207 = vrot.slane %v23, %v206
    %v208 = vmul.f32 %v142, %v207
    %v209 = vmul.f32 %v146, %v207
    %v210 = vmul.f32 %v150, %v207
    %v211 = vmul.f32 %v154, %v207
    %v212 = vmul.f32 %v158, %v207
    %v213 = vmul.f32 %v162, %v207
    %v214 = vmul.f32 %v166, %v207
    %v215 = vmul.f32 %v170, %v207
    %v216 = vmul.f32 %v174, %v207
    %v217 = vmul.f32 %v178, %v207
    %v218 = vmul.f32 %v182, %v207
    %v219 = vmul.f32 %v186, %v207
    %v220 = vmul.f32 %v190, %v207
    %v221 = vmul.f32 %v194, %v207
    %v222 = vmul.f32 %v198, %v207
    %v223 = vmul.f32 %v202, %v207
    %v224 = vadd.f32 %v124, %v208
    %v225 = vadd.f32 %v125, %v209
    %v226 = vadd.f32 %v126, %v210
    %v227 = vadd.f32 %v127, %v211
    %v228 = vadd.f32 %v128, %v212
    %v229 = vadd.f32 %v129, %v213
    %v230 = vadd.f32 %v130, %v214
    %v231 = vadd.f32 %v131, %v215
    %v232 = vadd.f32 %v132, %v216
    %v233 = vadd.f32 %v133, %v217
    %v234 = vadd.f32 %v134, %v218
    %v235 = vadd.f32 %v135, %v219
    %v236 = vadd.f32 %v136, %v220
    %v237 = vadd.f32 %v137, %v221
    %v238 = vadd.f32 %v138, %v222
    %v239 = vadd.f32 %v139, %v223
    %240 = vset.pattern.permute.xlu0 2
    %241 = vperm.xlu0 %240, %v24
    %v242 = vpop.permute.xlu0 %241
    %244 = vset.pattern.permute.xlu0 2
    %245 = vperm.xlu0 %244, %v25
    %v246 = vpop.permute.xlu0 %245
    %248 = vset.pattern.permute.xlu0 2
    %249 = vperm.xlu0 %248, %v26
    %v250 = vpop.permute.xlu0 %249
    %252 = vset.pattern.permute.xlu0 2
    %253 = vperm.xlu0 %252, %v27
    %v254 = vpop.permute.xlu0 %253
    %256 = vset.pattern.permute.xlu0 2
    %257 = vperm.xlu0 %256, %v28
    %v258 = vpop.permute.xlu0 %257
    %260 = vset.pattern.permute.xlu0 2
    %261 = vperm.xlu0 %260, %v29
    %v262 = vpop.permute.xlu0 %261
    %264 = vset.pattern.permute.xlu0 2
    %265 = vperm.xlu0 %264, %v30
    %v266 = vpop.permute.xlu0 %265
    %268 = vset.pattern.permute.xlu0 2
    %269 = vperm.xlu0 %268, %v31
    %v270 = vpop.permute.xlu0 %269
    %272 = vset.pattern.permute.xlu0 2
    %273 = vperm.xlu0 %272, %v32
    %v274 = vpop.permute.xlu0 %273
    %276 = vset.pattern.permute.xlu0 2
    %277 = vperm.xlu0 %276, %v33
    %v278 = vpop.permute.xlu0 %277
    %280 = vset.pattern.permute.xlu0 2
    %281 = vperm.xlu0 %280, %v34
    %v282 = vpop.permute.xlu0 %281
    %284 = vset.pattern.permute.xlu0 2
    %285 = vperm.xlu0 %284, %v35
    %v286 = vpop.permute.xlu0 %285
    %288 = vset.pattern.permute.xlu0 2
    %289 = vperm.xlu0 %288, %v36
    %v290 = vpop.permute.xlu0 %289
    %292 = vset.pattern.permute.xlu0 2
    %293 = vperm.xlu0 %292, %v37
    %v294 = vpop.permute.xlu0 %293
    %296 = vset.pattern.permute.xlu0 2
    %297 = vperm.xlu0 %296, %v38
    %v298 = vpop.permute.xlu0 %297
    %300 = vset.pattern.permute.xlu0 2
    %301 = vperm.xlu0 %300, %v39
    %v302 = vpop.permute.xlu0 %301
    %v304 = vlaneseq
    %v305 = vshrl.u32 %v304, 7
    %v306 = vsub.s32 2, %v305
    %v307 = vrot.slane %v23, %v306
    %v308 = vmul.f32 %v242, %v307
    %v309 = vmul.f32 %v246, %v307
    %v310 = vmul.f32 %v250, %v307
    %v311 = vmul.f32 %v254, %v307
    %v312 = vmul.f32 %v258, %v307
    %v313 = vmul.f32 %v262, %v307
    %v314 = vmul.f32 %v266, %v307
    %v315 = vmul.f32 %v270, %v307
    %v316 = vmul.f32 %v274, %v307
    %v317 = vmul.f32 %v278, %v307
    %v318 = vmul.f32 %v282, %v307
    %v319 = vmul.f32 %v286, %v307
    %v320 = vmul.f32 %v290, %v307
    %v321 = vmul.f32 %v294, %v307
    %v322 = vmul.f32 %v298, %v307
    %v323 = vmul.f32 %v302, %v307
    %v324 = vadd.f32 %v224, %v308
    %v325 = vadd.f32 %v225, %v309
    %v326 = vadd.f32 %v226, %v310
    %v327 = vadd.f32 %v227, %v311
    %v328 = vadd.f32 %v228, %v312
    %v329 = vadd.f32 %v229, %v313
    %v330 = vadd.f32 %v230, %v314
    %v331 = vadd.f32 %v231, %v315
    %v332 = vadd.f32 %v232, %v316
    %v333 = vadd.f32 %v233, %v317
    %v334 = vadd.f32 %v234, %v318
    %v335 = vadd.f32 %v235, %v319
    %v336 = vadd.f32 %v236, %v320
    %v337 = vadd.f32 %v237, %v321
    %v338 = vadd.f32 %v238, %v322
    %v339 = vadd.f32 %v239, %v323
    %340 = vset.pattern.permute.xlu0 3
    %341 = vperm.xlu0 %340, %v24
    %v342 = vpop.permute.xlu0 %341
    %344 = vset.pattern.permute.xlu0 3
    %345 = vperm.xlu0 %344, %v25
    %v346 = vpop.permute.xlu0 %345
    %348 = vset.pattern.permute.xlu0 3
    %349 = vperm.xlu0 %348, %v26
    %v350 = vpop.permute.xlu0 %349
    %352 = vset.pattern.permute.xlu0 3
    %353 = vperm.xlu0 %352, %v27
    %v354 = vpop.permute.xlu0 %353
    %356 = vset.pattern.permute.xlu0 3
    %357 = vperm.xlu0 %356, %v28
    %v358 = vpop.permute.xlu0 %357
    %360 = vset.pattern.permute.xlu0 3
    %361 = vperm.xlu0 %360, %v29
    %v362 = vpop.permute.xlu0 %361
    %364 = vset.pattern.permute.xlu0 3
    %365 = vperm.xlu0 %364, %v30
    %v366 = vpop.permute.xlu0 %365
    %368 = vset.pattern.permute.xlu0 3
    %369 = vperm.xlu0 %368, %v31
    %v370 = vpop.permute.xlu0 %369
    %372 = vset.pattern.permute.xlu0 3
    %373 = vperm.xlu0 %372, %v32
    %v374 = vpop.permute.xlu0 %373
    %376 = vset.pattern.permute.xlu0 3
    %377 = vperm.xlu0 %376, %v33
    %v378 = vpop.permute.xlu0 %377
    %380 = vset.pattern.permute.xlu0 3
    %381 = vperm.xlu0 %380, %v34
    %v382 = vpop.permute.xlu0 %381
    %384 = vset.pattern.permute.xlu0 3
    %385 = vperm.xlu0 %384, %v35
    %v386 = vpop.permute.xlu0 %385
    %388 = vset.pattern.permute.xlu0 3
    %389 = vperm.xlu0 %388, %v36
    %v390 = vpop.permute.xlu0 %389
    %392 = vset.pattern.permute.xlu0 3
    %393 = vperm.xlu0 %392, %v37
    %v394 = vpop.permute.xlu0 %393
    %396 = vset.pattern.permute.xlu0 3
    %397 = vperm.xlu0 %396, %v38
    %v398 = vpop.permute.xlu0 %397
    %400 = vset.pattern.permute.xlu0 3
    %401 = vperm.xlu0 %400, %v39
    %v402 = vpop.permute.xlu0 %401
    %v404 = vlaneseq
    %v405 = vshrl.u32 %v404, 7
    %v406 = vsub.s32 3, %v405
    %v407 = vrot.slane %v23, %v406
    %v408 = vmul.f32 %v342, %v407
    %v409 = vmul.f32 %v346, %v407
    %v410 = vmul.f32 %v350, %v407
    %v411 = vmul.f32 %v354, %v407
    %v412 = vmul.f32 %v358, %v407
    %v413 = vmul.f32 %v362, %v407
    %v414 = vmul.f32 %v366, %v407
    %v415 = vmul.f32 %v370, %v407
    %v416 = vmul.f32 %v374, %v407
    %v417 = vmul.f32 %v378, %v407
    %v418 = vmul.f32 %v382, %v407
    %v419 = vmul.f32 %v386, %v407
    %v420 = vmul.f32 %v390, %v407
    %v421 = vmul.f32 %v394, %v407
    %v422 = vmul.f32 %v398, %v407
    %v423 = vmul.f32 %v402, %v407
    %v424 = vadd.f32 %v324, %v408
    %v425 = vadd.f32 %v325, %v409
    %v426 = vadd.f32 %v326, %v410
    %v427 = vadd.f32 %v327, %v411
    %v428 = vadd.f32 %v328, %v412
    %v429 = vadd.f32 %v329, %v413
    %v430 = vadd.f32 %v330, %v414
    %v431 = vadd.f32 %v331, %v415
    %v432 = vadd.f32 %v332, %v416
    %v433 = vadd.f32 %v333, %v417
    %v434 = vadd.f32 %v334, %v418
    %v435 = vadd.f32 %v335, %v419
    %v436 = vadd.f32 %v336, %v420
    %v437 = vadd.f32 %v337, %v421
    %v438 = vadd.f32 %v338, %v422
    %v439 = vadd.f32 %v339, %v423
    %v440 = vld [vmem:[%s2] sm:$0xff]
    %v441 = vld [vmem:[%s2 + $0x8] sm:$0xff]
    %v442 = vld [vmem:[%s2 + $0x10] sm:$0xff]
    %v443 = vld [vmem:[%s2 + $0x18] sm:$0xff]
    %v444 = vld [vmem:[%s2 + $0x20] sm:$0xff]
    %v445 = vld [vmem:[%s2 + $0x28] sm:$0xff]
    %v446 = vld [vmem:[%s2 + $0x30] sm:$0xff]
    %v447 = vld [vmem:[%s2 + $0x38] sm:$0xff]
    %v448 = vld [vmem:[%s2 + $0x40] sm:$0xff]
    %v449 = vld [vmem:[%s2 + $0x48] sm:$0xff]
    %v450 = vld [vmem:[%s2 + $0x50] sm:$0xff]
    %v451 = vld [vmem:[%s2 + $0x58] sm:$0xff]
    %v452 = vld [vmem:[%s2 + $0x60] sm:$0xff]
    %v453 = vld [vmem:[%s2 + $0x68] sm:$0xff]
    %v454 = vld [vmem:[%s2 + $0x70] sm:$0xff]
    %v455 = vld [vmem:[%s2 + $0x78] sm:$0xff]
    %457 = vset.pattern.permute.xlu0 0
    %458 = vperm.xlu0 %457, %v440
    %v459 = vpop.permute.xlu0 %458
    %462 = vset.pattern.permute.xlu0 0
    %463 = vperm.xlu0 %462, %v441
    %v464 = vpop.permute.xlu0 %463
    %467 = vset.pattern.permute.xlu0 0
    %468 = vperm.xlu0 %467, %v442
    %v469 = vpop.permute.xlu0 %468
    %472 = vset.pattern.permute.xlu0 0
    %473 = vperm.xlu0 %472, %v443
    %v474 = vpop.permute.xlu0 %473
    %477 = vset.pattern.permute.xlu0 0
    %478 = vperm.xlu0 %477, %v444
    %v479 = vpop.permute.xlu0 %478
    %482 = vset.pattern.permute.xlu0 0
    %483 = vperm.xlu0 %482, %v445
    %v484 = vpop.permute.xlu0 %483
    %487 = vset.pattern.permute.xlu0 0
    %488 = vperm.xlu0 %487, %v446
    %v489 = vpop.permute.xlu0 %488
    %492 = vset.pattern.permute.xlu0 0
    %493 = vperm.xlu0 %492, %v447
    %v494 = vpop.permute.xlu0 %493
    %497 = vset.pattern.permute.xlu0 0
    %498 = vperm.xlu0 %497, %v448
    %v499 = vpop.permute.xlu0 %498
    %502 = vset.pattern.permute.xlu0 0
    %503 = vperm.xlu0 %502, %v449
    %v504 = vpop.permute.xlu0 %503
    %507 = vset.pattern.permute.xlu0 0
    %508 = vperm.xlu0 %507, %v450
    %v509 = vpop.permute.xlu0 %508
    %512 = vset.pattern.permute.xlu0 0
    %513 = vperm.xlu0 %512, %v451
    %v514 = vpop.permute.xlu0 %513
    %517 = vset.pattern.permute.xlu0 0
    %518 = vperm.xlu0 %517, %v452
    %v519 = vpop.permute.xlu0 %518
    %522 = vset.pattern.permute.xlu0 0
    %523 = vperm.xlu0 %522, %v453
    %v524 = vpop.permute.xlu0 %523
    %527 = vset.pattern.permute.xlu0 0
    %528 = vperm.xlu0 %527, %v454
    %v529 = vpop.permute.xlu0 %528
    %532 = vset.pattern.permute.xlu0 0
    %533 = vperm.xlu0 %532, %v455
    %v534 = vpop.permute.xlu0 %533
    %v536 = vadd.f32 %v424, %v459
    %v537 = vadd.f32 %v425, %v464
    %v538 = vadd.f32 %v426, %v469
    %v539 = vadd.f32 %v427, %v474
    %v540 = vadd.f32 %v428, %v479
    %v541 = vadd.f32 %v429, %v484
    %v542 = vadd.f32 %v430, %v489
    %v543 = vadd.f32 %v431, %v494
    %v544 = vadd.f32 %v432, %v499
    %v545 = vadd.f32 %v433, %v504
    %v546 = vadd.f32 %v434, %v509
    %v547 = vadd.f32 %v435, %v514
    %v548 = vadd.f32 %v436, %v519
    %v549 = vadd.f32 %v437, %v524
    %v550 = vadd.f32 %v438, %v529
    %v551 = vadd.f32 %v439, %v534
    %v552 = vmax.f32 %v536, 0.0
    %v553 = vmax.f32 %v537, 0.0
    %v554 = vmax.f32 %v538, 0.0
    %v555 = vmax.f32 %v539, 0.0
    %v556 = vmax.f32 %v540, 0.0
    %v557 = vmax.f32 %v541, 0.0
    %v558 = vmax.f32 %v542, 0.0
    %v559 = vmax.f32 %v543, 0.0
    %v560 = vmax.f32 %v544, 0.0
    %v561 = vmax.f32 %v545, 0.0
    %v562 = vmax.f32 %v546, 0.0
    %v563 = vmax.f32 %v547, 0.0
    %v564 = vmax.f32 %v548, 0.0
    %v565 = vmax.f32 %v549, 0.0
    %v566 = vmax.f32 %v550, 0.0
    %v567 = vmax.f32 %v551, 0.0
    %v568 = vld [vmem:[%s3] sm:$0xff]
    %v569 = vld [vmem:[%s3 + $0x8] sm:$0xff]
    %v570 = vld [vmem:[%s3 + $0x10] sm:$0xff]
    %v571 = vld [vmem:[%s3 + $0x18] sm:$0xff]
    %v572 = vld [vmem:[%s3 + $0x20] sm:$0xff]
    %v573 = vld [vmem:[%s3 + $0x28] sm:$0xff]
    %v574 = vld [vmem:[%s3 + $0x30] sm:$0xff]
    %v575 = vld [vmem:[%s3 + $0x38] sm:$0xff]
    %v576 = vld [vmem:[%s3 + $0x40] sm:$0xff]
    %v577 = vld [vmem:[%s3 + $0x48] sm:$0xff]
    %v578 = vld [vmem:[%s3 + $0x50] sm:$0xff]
    %v579 = vld [vmem:[%s3 + $0x58] sm:$0xff]
    %v580 = vld [vmem:[%s3 + $0x60] sm:$0xff]
    %v581 = vld [vmem:[%s3 + $0x68] sm:$0xff]
    %v582 = vld [vmem:[%s3 + $0x70] sm:$0xff]
    %v583 = vld [vmem:[%s3 + $0x78] sm:$0xff]
    %585 = vset.pattern.permute.xlu0 0
    %586 = vperm.xlu0 %585, %v568
    %v587 = vpop.permute.xlu0 %586
    %590 = vset.pattern.permute.xlu0 0
    %591 = vperm.xlu0 %590, %v569
    %v592 = vpop.permute.xlu0 %591
    %595 = vset.pattern.permute.xlu0 0
    %596 = vperm.xlu0 %595, %v570
    %v597 = vpop.permute.xlu0 %596
    %600 = vset.pattern.permute.xlu0 0
    %601 = vperm.xlu0 %600, %v571
    %v602 = vpop.permute.xlu0 %601
    %605 = vset.pattern.permute.xlu0 0
    %606 = vperm.xlu0 %605, %v572
    %v607 = vpop.permute.xlu0 %606
    %610 = vset.pattern.permute.xlu0 0
    %611 = vperm.xlu0 %610, %v573
    %v612 = vpop.permute.xlu0 %611
    %615 = vset.pattern.permute.xlu0 0
    %616 = vperm.xlu0 %615, %v574
    %v617 = vpop.permute.xlu0 %616
    %620 = vset.pattern.permute.xlu0 0
    %621 = vperm.xlu0 %620, %v575
    %v622 = vpop.permute.xlu0 %621
    %625 = vset.pattern.permute.xlu0 0
    %626 = vperm.xlu0 %625, %v576
    %v627 = vpop.permute.xlu0 %626
    %630 = vset.pattern.permute.xlu0 0
    %631 = vperm.xlu0 %630, %v577
    %v632 = vpop.permute.xlu0 %631
    %635 = vset.pattern.permute.xlu0 0
    %636 = vperm.xlu0 %635, %v578
    %v637 = vpop.permute.xlu0 %636
    %640 = vset.pattern.permute.xlu0 0
    %641 = vperm.xlu0 %640, %v579
    %v642 = vpop.permute.xlu0 %641
    %645 = vset.pattern.permute.xlu0 0
    %646 = vperm.xlu0 %645, %v580
    %v647 = vpop.permute.xlu0 %646
    %650 = vset.pattern.permute.xlu0 0
    %651 = vperm.xlu0 %650, %v581
    %v652 = vpop.permute.xlu0 %651
    %655 = vset.pattern.permute.xlu0 0
    %656 = vperm.xlu0 %655, %v582
    %v657 = vpop.permute.xlu0 %656
    %660 = vset.pattern.permute.xlu0 0
    %661 = vperm.xlu0 %660, %v583
    %v662 = vpop.permute.xlu0 %661
    %v664 = vmul.f32 %v587, %v552
    %v665 = vmul.f32 %v592, %v553
    %v666 = vmul.f32 %v597, %v554
    %v667 = vmul.f32 %v602, %v555
    %v668 = vmul.f32 %v607, %v556
    %v669 = vmul.f32 %v612, %v557
    %v670 = vmul.f32 %v617, %v558
    %v671 = vmul.f32 %v622, %v559
    %v672 = vmul.f32 %v627, %v560
    %v673 = vmul.f32 %v632, %v561
    %v674 = vmul.f32 %v637, %v562
    %v675 = vmul.f32 %v642, %v563
    %v676 = vmul.f32 %v647, %v564
    %v677 = vmul.f32 %v652, %v565
    %v678 = vmul.f32 %v657, %v566
    %v679 = vmul.f32 %v662, %v567
    %v680 = vadd.f32 %v664, %v665
    %v681 = vadd.f32 %v680, %v666
    %v682 = vadd.f32 %v681, %v667
    %v683 = vadd.f32 %v682, %v668
    %v684 = vadd.f32 %v683, %v669
    %v685 = vadd.f32 %v684, %v670
    %v686 = vadd.f32 %v685, %v671
    %v687 = vadd.f32 %v686, %v672
    %v688 = vadd.f32 %v687, %v673
    %v689 = vadd.f32 %v688, %v674
    %v690 = vadd.f32 %v689, %v675
    %v691 = vadd.f32 %v690, %v676
    %v692 = vadd.f32 %v691, %v677
    %v693 = vadd.f32 %v692, %v678
    %v694 = vadd.f32 %v693, %v679
    %v695 = vrot.slane %v694, 4
    %v696 = vadd.f32 %v694, %v695
    %v697 = vrot.slane %v696, 2
    %v698 = vadd.f32 %v696, %v697
    %v699 = vrot.slane %v698, 1
    %v700 = vadd.f32 %v698, %v699
    %v701 = vld [vmem:[#allocation2] sm:$0x1]
    %703 = vset.pattern.permute.xlu0 0
    %704 = vperm.xlu0 %703, %v701
    %v705 = vpop.permute.xlu0 %704
    %v707 = vlaneseq
    %v708 = vshrl.u32 %v707, 7
    %v709 = vsub.s32 0, %v708
    %v710 = vrot.slane %v705, %v709
    %v711 = vadd.f32 %v700, %v710
    %v712 = vsub.f32 0.0, %v711
    %v713 = vmul.f32 %v712, 1.442695
    %v714 = vpow.pop %v713
    %v715 = vadd.f32 %v714, 1.0
    %v716 = vrcp.pop %v715
    %v717 = vmul.f32 1.0, %v716
    %v718 = vsub.f32 1.0, %v717
    %719 = vst [vmem:[#allocation3] sm:$0x1] %v717
    %720 = vst [vmem:[#allocation3 + $0x1] sm:$0x1] %v718
    // Predicated region
    $region22: #{tpu_custom_call.1} parent=1 // pred_check
      _
    $region23: #{tpu_custom_call.1} parent=1 // pred_check_branch
      %722 = sbr.rel (0) target = $region25
    $region24: #{tpu_custom_call.1} parent=1 // pred_region
      %s724 = ssub.s32 32, 32
      %725 = vsyncadd [#allocation4], %s724
      %s727 = sshll.u32 [#allocation3], 4
      %s728 = int_to_ptr.vmem [resolvable:$true] %s727
      %730 = dma.vmem_to_hbm [thread:$0]  %s728, 32, %s5, [#allocation4]
    $region25: #{tpu_custom_call.1} parent=1 // pred_fallthru
      _
    // Predicated region
    $region26: #{tpu_custom_call.1} parent=1 // pred_check
      _
    $region27: #{tpu_custom_call.1} parent=1 // pred_check_branch
      %732 = sbr.rel (0) target = $region29
    $region28: #{tpu_custom_call.1} parent=1 // pred_region
      %733 = dma.done [#allocation4], 32
    $region29: #{tpu_custom_call.1} parent=1 // pred_fallthru
      _
    %734 = vsyncpa [#allocation4], 1

</llo_original>
